<compile_context>
chip_gen: v5e
topology: v5e:2x2
jax: 0.10.0
libtpu: 0.0.40
codegen_flags: <defaults>
</compile_context>

<pallas_src>
import jax
import jax.numpy as jnp
from jax.experimental import pallas as pl
from jax.experimental.pallas import tpu as pltpu


def _chomp1d_kernel(x_ref, o_ref):
    # Pure pass-through: both refs see identical (TM, TL) tiles; the chomp is
    # expressed purely through the output array extent / BlockSpecs.
    o_ref[...] = x_ref[...]


def _round_up(v: int, m: int) -> int:
    return ((v + m - 1) // m) * m


_FALLBACK_BYTES = 2 << 20   # below this, a plain XLA slice beats kernel launch overhead
_TILE_BYTES = 4 << 20       # ~4 MiB per tile -> <= ~16 MiB live (in+out, 2-deep buffering)
_TL_CAP = 4096              # keep whole L_out in one lane block up to 4096 lanes


def chomp1d(x: jnp.ndarray, chomp_size: int, *, force_kernel: bool = False) -> jnp.ndarray:
    """Pallas implementation of _Chomp1d.forward for x of shape (N, C, L)."""
    n, c, l = x.shape
    # Documented divergence: PyTorch's chomp_size=0 yields an empty tensor; TCNs
    # always use chomp_size > 0, so we require it.
    assert 0 < chomp_size < l, "chomp_size must be in (0, L)"
    l_out = l - chomp_size

    rows = n * c
    itemsize = jnp.dtype(x.dtype).itemsize

    # ---- Small-shape fast path: XLA slice, no kernel launch. ----------------
    if not force_kernel and rows * l_out * itemsize < _FALLBACK_BYTES:
        return x[:, :, :l_out]

    # Sublane pack: 8 rows for 4-byte dtypes, 16 for 2-byte, 32 for 1-byte.
    sublane_pack = max(8, 32 // itemsize)
    l_out_rounded = _round_up(l_out, 128)

    # Lane block: prefer the entire (rounded) temporal extent in one block so
    # each output writeback is a single contiguous slab; split only past 4096.
    tl = min(l_out_rounded, _TL_CAP)

    # Row block: fill the ~4 MiB tile byte budget (dtype-aware), grow TM when a
    # short L_out caps TL.  Keep TM a multiple of the sublane pack.
    tm_budget = max(sublane_pack,
                    (_TILE_BYTES // (tl * itemsize)) // sublane_pack * sublane_pack)
    tm = min(_round_up(rows, sublane_pack), tm_budget)

    # Megacore (v7x): if the whole problem fits one block, split the row axis so
    # both TensorCores get a block.  Harmless on single-TC v5e/v6e.
    if rows <= tm and l_out_rounded <= tl and rows > 2 * sublane_pack:
        tm = _round_up(pl.cdiv(rows, 2), sublane_pack)

    x2d = x.reshape(rows, l)
    grid = (pl.cdiv(rows, tm), pl.cdiv(l_out, tl))

    out2d = pl.pallas_call(
        _chomp1d_kernel,
        out_shape=jax.ShapeDtypeStruct((rows, l_out), x.dtype),
        grid=grid,
        # Identical block shape + index_map for input and output: block j of the
        # input covers the same lane window [j*TL, (j+1)*TL) as the output, so
        # only the first ~L_out lanes of x are ever fetched (the last input lane
        # block may read past L_out/L; Pallas clamps/pads partial blocks and the
        # output store is masked to L_out).
        in_specs=[pl.BlockSpec((tm, tl), lambda i, j: (i, j))],
        out_specs=pl.BlockSpec((tm, tl), lambda i, j: (i, j)),
        compiler_params=pltpu.CompilerParams(
            # Both axes independent -> shard across the 2 TCs on v7x.
            dimension_semantics=("parallel", "parallel"),
            # ~16 MiB live (4 MiB tiles, 2-deep in + out) + headroom; safe on
            # v5e/v6e/v7x without generation gating.
            vmem_limit_bytes=32 * 1024 * 1024,
        ),
        # Pure bandwidth: read + write of N*C*L_out elements.
        cost_estimate=pl.CostEstimate(
            flops=0,
            transcendentals=0,
            bytes_accessed=2 * rows * l_out * itemsize,
        ),
    )(x2d)

    return out2d.reshape(n, c, l_out)


if __name__ == "__main__":
    key = jax.random.PRNGKey(0)
    chomp_size = 3  # _Chomp1d(chomp_size=3)

    # (1) Tiny shape consistent with a Conv1d feature map: (batch=2, channels=4,
    #     length=16).  Takes the XLA-slice fast path.
    x_small = jax.random.normal(key, (2, 4, 16), dtype=jnp.float32)
    out_small = jax.block_until_ready(chomp1d(x_small, chomp_size))
    ref_small = x_small[:, :, :-chomp_size]
    assert out_small.shape == (2, 4, 13), out_small.shape
    assert jnp.array_equal(out_small, ref_small), "fast path mismatch vs reference slice"

    # (2) Same tiny shape forced through the Pallas kernel (single masked tile)
    #     so the pallas_call path is exercised and checked.
    out_kernel = jax.block_until_ready(chomp1d(x_small, chomp_size, force_kernel=True))
    assert out_kernel.shape == (2, 4, 13), out_kernel.shape
    assert jnp.array_equal(out_kernel, ref_small), "kernel path mismatch vs reference slice"

    # (3) Slightly larger (still small) shape forced through the kernel so the
    #     multi-row-block / megacore-split path is exercised too.
    x_med = jax.random.normal(jax.random.fold_in(key, 1), (4, 8, 300), dtype=jnp.float32)
    out_med = jax.block_until_ready(chomp1d(x_med, chomp_size, force_kernel=True))
    assert out_med.shape == (4, 8, 297), out_med.shape
    assert jnp.array_equal(out_med, x_med[:, :, :-chomp_size]), "tiled kernel mismatch"

    print("KERNEL_OK")
</pallas_src>

<mosaic_0001>
module attributes {stable_mosaic.version = 11 : i64} {
  func.func @_chomp1d_kernel(%arg0: i32, %arg1: i32, %arg2: memref<8x128xf32, #tpu.memory_space<vmem>>, %arg3: memref<8x128xf32, #tpu.memory_space<vmem>>) attributes {dimension_semantics = [#tpu.dimension_semantics<parallel>, #tpu.dimension_semantics<parallel>], iteration_bounds = array<i64: 1, 1>, scalar_prefetch = 0 : i64, scratch_operands = 0 : i64, tpu.core_type = #tpu.core_type<tc>, window_params = [{transform_indices = @transform_0, window_bounds = array<i64: 8, 128>}, {transform_indices = @transform_1, window_bounds = array<i64: 8, 128>}]} {
    %c0 = arith.constant 0 : index
    %c0_0 = arith.constant 0 : index
    %0 = vector.load %arg2[%c0, %c0_0] : memref<8x128xf32, #tpu.memory_space<vmem>>, vector<8x128xf32>
    %c0_1 = arith.constant 0 : index
    %c0_2 = arith.constant 0 : index
    %1 = vector.load %arg3[%c0_1, %c0_2] : memref<8x128xf32, #tpu.memory_space<vmem>>, vector<8x128xf32>
    tpu.vector_store %arg3[%c0_1, %c0_2], %0 {strides = array<i32>} : memref<8x128xf32, #tpu.memory_space<vmem>>, vector<8x128xf32>,
    return
  }
  func.func @transform_0(%arg0: i32, %arg1: i32) -> (i32, i32) {
    %c0_i32 = arith.constant 0 : i32
    return %arg0, %arg1 : i32, i32
  }
  func.func @transform_1(%arg0: i32, %arg1: i32) -> (i32, i32) {
    %c0_i32 = arith.constant 0 : i32
    return %arg0, %arg1 : i32, i32
  }
}

</mosaic_0001>

<llo_original>
// kernel: tpu_custom_call.1
$region0: #{tpu_custom_call.1}
  #allocation0 [shape = 'u32[]', space=smem, size = 0x4, offset = 0x4, fixed_abs, tag = 'smem constant byte address 0x4 - core index']
  #allocation1 [shape = 'u32[72,128]{1,0:T(1,128)}', space=vmem, size = 0x9000, scoped, tag = 'internal scratch']
  %s0 = inlined_call_operand.hbm [shape: f32[8,16], index: 0, kind: input, shape index: {}]
  %s1 = inlined_call_operand.hbm [shape: f32[8,13], index: 1, kind: output, shape index: {}]
  %s2 = sld [smem:[#allocation0]]
  $region18: #{tpu_custom_call.1} parent=0
    _
  %s4 = ssub.s32 1, %s2
  %s5 = scalar_select 0, %s4, %s2
  $region1: #{tpu_custom_call.1} parent=0
    #allocation2 [shape = 'u8[4096]{0}', space=vmem, size = 0x1000, scoped, tag = 'input window, operand 0, single buffered']
    #allocation3 [shape = 's32[1]{0}', space=sflag, size = 0x4, scoped, tag = 'scoped memory for tpu_custom_call.1']
    #allocation4 [shape = 's32[1]{0}', space=sflag, size = 0x4, scoped, tag = 'scoped memory for tpu_custom_call.1']
    #allocation5 [shape = 'u8[4096]{0}', space=vmem, size = 0x1000, scoped, tag = 'output window, operand 0, single buffered']
    %6 = vsyncpa [#allocation3], 0
    %7 = vsyncpa [#allocation4], 0
    // Predicated region
    $region2: #{tpu_custom_call.1} parent=1 // pred_check
      _
    $region3: #{tpu_custom_call.1} parent=1 // pred_check_branch
      %9 = sbr.rel (0) target = $region5
    $region4: #{tpu_custom_call.1} parent=1 // pred_region
      %11 = vsyncadd [#allocation3], 0
      %s13 = sshll.u32 %s0, 4
      %s14 = int_to_ptr.hbm [resolvable:$true] %s13
      %s15 = sshll.u32 [#allocation2], 4
      %s16 = int_to_ptr.vmem [resolvable:$true] %s15
      %18 = dma.hbm_to_vmem [thread:$0]  %s14, 128, %s16, [#allocation3]
    $region5: #{tpu_custom_call.1} parent=1 // pred_fallthru
      _
    // Predicated region
    $region6: #{tpu_custom_call.1} parent=1 // pred_check
      _
    $region7: #{tpu_custom_call.1} parent=1 // pred_check_branch
      %20 = sbr.rel (0) target = $region9
    $region8: #{tpu_custom_call.1} parent=1 // pred_region
      %22 = dma.done [#allocation3], 128
    $region9: #{tpu_custom_call.1} parent=1 // pred_fallthru
      _
    %v23 = vld [vmem:[#allocation2] sm:$0xff]
    %24 = vst [vmem:[#allocation5] sm:$0xff] %v23
    // Predicated region
    $region10: #{tpu_custom_call.1} parent=1 // pred_check
      _
    $region11: #{tpu_custom_call.1} parent=1 // pred_check_branch
      %26 = sbr.rel (0) target = $region13
    $region12: #{tpu_custom_call.1} parent=1 // pred_region
      %28 = vsyncadd [#allocation4], 0
      %s30 = sshll.u32 [#allocation5], 4
      %s31 = int_to_ptr.vmem [resolvable:$true] %s30
      %s32 = sshll.u32 %s1, 4
      %s33 = int_to_ptr.hbm [resolvable:$true] %s32
      %35 = dma.vmem_to_hbm [thread:$0]  %s31, 128, %s33, [#allocation4]
    $region13: #{tpu_custom_call.1} parent=1 // pred_fallthru
      _
    // Predicated region
    $region14: #{tpu_custom_call.1} parent=1 // pred_check
      _
    $region15: #{tpu_custom_call.1} parent=1 // pred_check_branch
      %37 = sbr.rel (0) target = $region17
    $region16: #{tpu_custom_call.1} parent=1 // pred_region
      %39 = dma.done [#allocation4], 128
    $region17: #{tpu_custom_call.1} parent=1 // pred_fallthru
      _
    %40 = vsyncpa [#allocation3], 1
    %41 = vsyncpa [#allocation4], 1

</llo_original>
